<compile_context>
chip_gen: v7x
topology: tpu7x:2x2x1
jax: 0.10.0
libtpu: 0.0.40
codegen_flags: <defaults>
</compile_context>

<pallas_src>
import jax
import jax.numpy as jnp
from jax import lax
from jax.experimental import pallas as pl
from jax.experimental.pallas import tpu as pltpu

HIDDEN = 64
EPS = 1e-5
# output column layout: [close:1 | trans:1 | rot:3 | tune:3] = 8
OUT_DIM = 8
OUT_PAD = 128       # lane-dense padded output width; wrapper slices back to OUT_DIM


def _detokenizer_kernel(x_ref, w0_ref, g_ref, beta_ref, w1_ref, b1_ref, o_ref):
    n = x_ref.shape[0]
    inv_n = jnp.float32(1.0 / n)

    # ---- first linear of all 4 heads, fused: (N, D) @ (D, 4H) -- bf16 MXU, f32 acc ----
    # b0 omitted: it cancels exactly under training-mode BatchNorm (mean-subtracted,
    # variance unaffected by a per-column constant).
    x_bf = x_ref[...].astype(jnp.bfloat16)
    w0_bf = w0_ref[...].astype(jnp.bfloat16)
    h = jnp.dot(x_bf, w0_bf, preferred_element_type=jnp.float32)          # (N, 4H)

    # ---- BatchNorm1d (training mode: batch stats, biased variance), one-pass fused ----
    s1 = jnp.sum(h, axis=0, keepdims=True)             # (1, 4H)
    s2 = jnp.sum(h * h, axis=0, keepdims=True)         # (1, 4H)
    mean = s1 * inv_n
    var = s2 * inv_n - mean * mean
    a = g_ref[...] * lax.rsqrt(var + EPS)               # folded scale   (EUP rsqrt)
    c = beta_ref[...] - mean * a                        # folded shift
    hn = jnp.maximum(h * a + c, 0.0)                    # BN + ReLU in one VPU pass

    # ---- second linears, block-diagonal: (N, 4H) @ (4H, OUT_PAD) -- bf16 MXU, f32 acc ----
    out = jnp.dot(hn.astype(jnp.bfloat16), w1_ref[...].astype(jnp.bfloat16),
                  preferred_element_type=jnp.float32) + b1_ref[...]       # (N, OUT_PAD)

    # ---- rot / tune: divide by Frobenius norm of each whole (N, 3) sub-tensor ----
    sq = jnp.sum(out * out, axis=0, keepdims=True)      # (1, OUT_PAD) per-column sum-of-squares
    rot_inv = lax.rsqrt(jnp.sum(sq[:, 2:5]))
    tune_inv = lax.rsqrt(jnp.sum(sq[:, 5:8]))
    col = lax.broadcasted_iota(jnp.int32, (1, OUT_PAD), 1)
    scale = jnp.where((col >= 2) & (col < 5), rot_inv,
                      jnp.where((col >= 5) & (col < 8), tune_inv, 1.0))
    o_ref[...] = (out * scale).astype(o_ref.dtype)       # padded cols are exactly 0


@jax.jit
def action_detokenizer_forward(x, params):
    """x: (N, D) float32. params: dict of fused weights. Returns (N, 8) float32."""
    N, D = x.shape
    w0, gamma, beta, w1, b1 = (params["w0"], params["gamma"], params["beta"],
                               params["w1"], params["b1"])
    four_h = w0.shape[1]

    # Pad second layer to a lane-dense (4H, 128) / (1, 128); padded output columns are 0,
    # so stores in-kernel are full-width unmasked vst.
    w1p = jnp.zeros((four_h, OUT_PAD), w1.dtype).at[:, :OUT_DIM].set(w1)
    b1p = jnp.zeros((1, OUT_PAD), b1.dtype).at[:, :OUT_DIM].set(b1)

    vmem = pl.BlockSpec(memory_space=pltpu.MemorySpace.VMEM)
    flops = 2 * N * D * four_h + 2 * N * four_h * OUT_PAD + 10 * N * four_h
    bytes_accessed = 4 * (x.size + w0.size + gamma.size + beta.size
                          + w1p.size + b1p.size + N * OUT_PAD)

    out_pad = pl.pallas_call(
        _detokenizer_kernel,
        out_shape=jax.ShapeDtypeStruct((N, OUT_PAD), jnp.float32),
        in_specs=[vmem] * 6,      # x, w0, gamma, beta, w1p, b1p
        out_specs=vmem,
        cost_estimate=pl.CostEstimate(flops=flops,
                                      transcendentals=four_h + 2,
                                      bytes_accessed=bytes_accessed),
    )(x, w0, gamma, beta, w1p, b1p)
    return out_pad[:, :OUT_DIM]


def make_params(key, action_token_dim):
    """Deterministic synthetic parameters for the 4 heads, fused for the kernel."""
    D, H = action_token_dim, HIDDEN
    out_dims = [1, 1, 3, 3]  # close, trans, rot, tune
    ks = jax.random.split(key, 16)
    ki = iter(range(16))

    w0_list, b0_list, g_list, beta_list = [], [], [], []
    w1_blocks, b1_list = [], []
    for od in out_dims:
        w0_list.append(jax.random.normal(ks[next(ki)], (D, H), jnp.float32) * 0.2)
        b0_list.append(jax.random.normal(ks[next(ki)], (H,), jnp.float32) * 0.1)
        g_list.append(1.0 + 0.1 * jax.random.normal(ks[next(ki)], (H,), jnp.float32))
        beta_list.append(0.1 * jax.random.normal(ks[next(ki)], (H,), jnp.float32))
        k2 = jax.random.fold_in(key, 100 + od * 7 + len(w1_blocks))
        w1_blocks.append(jax.random.normal(k2, (H, od), jnp.float32) * 0.2)
        k3 = jax.random.fold_in(key, 200 + od * 7 + len(b1_list))
        b1_list.append(jax.random.normal(k3, (od,), jnp.float32) * 0.1)

    w0 = jnp.concatenate(w0_list, axis=1)                      # (D, 4H)
    b0 = jnp.concatenate(b0_list)[None, :]                     # (1, 4H)  (reference only)
    gamma = jnp.concatenate(g_list)[None, :]                   # (1, 4H)
    beta = jnp.concatenate(beta_list)[None, :]                 # (1, 4H)

    # block-diagonal second layer: rows [i*H:(i+1)*H] feed only head i's output cols
    w1 = jnp.zeros((4 * H, OUT_DIM), jnp.float32)
    col_off = 0
    for i, od in enumerate(out_dims):
        w1 = w1.at[i * H:(i + 1) * H, col_off:col_off + od].set(w1_blocks[i])
        col_off += od
    b1 = jnp.concatenate(b1_list)[None, :]                     # (1, 8)

    return {"w0": w0, "b0": b0, "gamma": gamma, "beta": beta, "w1": w1, "b1": b1}


def reference_forward(x, params):
    """Pure-JAX (f32) reference mirroring the PyTorch module, for a correctness check.

    Keeps the first-layer bias b0 to demonstrate it cancels under training-mode BN.
    """
    h = x @ params["w0"] + params["b0"]
    mean = jnp.mean(h, axis=0, keepdims=True)
    var = jnp.mean((h - mean) ** 2, axis=0, keepdims=True)
    hn = (h - mean) / jnp.sqrt(var + EPS) * params["gamma"] + params["beta"]
    hn = jnp.maximum(hn, 0.0)
    out = hn @ params["w1"] + params["b1"]
    close, trans, rot, tune = out[:, 0:1], out[:, 1:2], out[:, 2:5], out[:, 5:8]
    rot = rot / jnp.linalg.norm(rot)
    tune = tune / jnp.linalg.norm(tune)
    return jnp.concatenate([close, trans, rot, tune], axis=-1)


if __name__ == "__main__":
    key = jax.random.PRNGKey(0)
    N, action_token_dim = 8, 32

    k_x, k_p = jax.random.split(key)
    x = jax.random.normal(k_x, (N, action_token_dim), jnp.float32)
    params = make_params(k_p, action_token_dim)

    out = action_detokenizer_forward(x, params)
    out = jax.block_until_ready(out)

    ref = reference_forward(x, params)
    assert out.shape == (N, OUT_DIM)
    # kernel runs the two matmuls with bf16 operands (f32 accumulate) => loose tolerance
    assert jnp.allclose(out, ref, atol=5e-2, rtol=5e-2), "mismatch vs reference"
    print("KERNEL_OK")
</pallas_src>

<mosaic_0001>
module attributes {stable_mosaic.version = 11 : i64} {
  func.func @_detokenizer_kernel(%arg0: memref<8x32xf32, #tpu.memory_space<vmem>>, %arg1: memref<32x256xf32, #tpu.memory_space<vmem>>, %arg2: memref<1x256xf32, #tpu.memory_space<vmem>>, %arg3: memref<1x256xf32, #tpu.memory_space<vmem>>, %arg4: memref<256x128xf32, #tpu.memory_space<vmem>>, %arg5: memref<1x128xf32, #tpu.memory_space<vmem>>, %arg6: memref<8x128xf32, #tpu.memory_space<vmem>>) attributes {dimension_semantics = [], scalar_prefetch = 0 : i64, scratch_operands = 0 : i64, tpu.core_type = #tpu.core_type<tc>} {
    %c0 = arith.constant 0 : index
    %c0_0 = arith.constant 0 : index
    %0 = vector.load %arg0[%c0, %c0_0] : memref<8x32xf32, #tpu.memory_space<vmem>>, vector<8x32xf32>
    %1 = arith.truncf %0 : vector<8x32xf32> to vector<8x32xbf16>
    %c0_1 = arith.constant 0 : index
    %c0_2 = arith.constant 0 : index
    %2 = vector.load %arg1[%c0_1, %c0_2] : memref<32x256xf32, #tpu.memory_space<vmem>>, vector<32x256xf32>
    %3 = arith.truncf %2 : vector<32x256xf32> to vector<32x256xbf16>
    %cst = arith.constant dense<0.000000e+00> : vector<8x256xf32>
    %4 = tpu.matmul %1, %3, %cst {dimension_numbers = #tpu.dot_dimension_numbers<[1], [0], [0], [1], [0, 0, 1, 1], [], []>} : vector<8x32xbf16>, vector<32x256xbf16>, vector<8x256xf32> -> vector<8x256xf32>
    %cst_3 = arith.constant dense<0.000000e+00> : vector<256xf32>
    %5 = vector.multi_reduction <add>, %4, %cst_3 [0] : vector<8x256xf32> to vector<256xf32>
    %6 = vector.shape_cast %5 : vector<256xf32> to vector<1x256xf32>
    %7 = arith.mulf %4, %4 : vector<8x256xf32>
    %cst_4 = arith.constant dense<0.000000e+00> : vector<256xf32>
    %8 = vector.multi_reduction <add>, %7, %cst_4 [0] : vector<8x256xf32> to vector<256xf32>
    %9 = vector.shape_cast %8 : vector<256xf32> to vector<1x256xf32>
    %cst_5 = arith.constant 1.250000e-01 : f32
    %10 = vector.broadcast %cst_5 : f32 to vector<1x256xf32>
    %11 = arith.mulf %6, %10 : vector<1x256xf32>
    %cst_6 = arith.constant 1.250000e-01 : f32
    %12 = vector.broadcast %cst_6 : f32 to vector<1x256xf32>
    %13 = arith.mulf %9, %12 : vector<1x256xf32>
    %14 = arith.mulf %11, %11 : vector<1x256xf32>
    %15 = arith.subf %13, %14 : vector<1x256xf32>
    %c0_7 = arith.constant 0 : index
    %c0_8 = arith.constant 0 : index
    %16 = vector.load %arg2[%c0_7, %c0_8] : memref<1x256xf32, #tpu.memory_space<vmem>>, vector<1x256xf32>
    %cst_9 = arith.constant 9.99999974E-6 : f32
    %17 = vector.broadcast %cst_9 : f32 to vector<1x256xf32>
    %18 = arith.addf %15, %17 : vector<1x256xf32>
    %19 = math.rsqrt %18 : vector<1x256xf32>
    %20 = arith.mulf %16, %19 : vector<1x256xf32>
    %c0_10 = arith.constant 0 : index
    %c0_11 = arith.constant 0 : index
    %21 = vector.load %arg3[%c0_10, %c0_11] : memref<1x256xf32, #tpu.memory_space<vmem>>, vector<1x256xf32>
    %22 = arith.mulf %11, %20 : vector<1x256xf32>
    %23 = arith.subf %21, %22 : vector<1x256xf32>
    %24 = vector.broadcast %20 : vector<1x256xf32> to vector<8x256xf32>
    %25 = arith.mulf %4, %24 : vector<8x256xf32>
    %26 = vector.broadcast %23 : vector<1x256xf32> to vector<8x256xf32>
    %27 = arith.addf %25, %26 : vector<8x256xf32>
    %cst_12 = arith.constant 0.000000e+00 : f32
    %28 = vector.broadcast %cst_12 : f32 to vector<8x256xf32>
    %29 = arith.maximumf %27, %28 : vector<8x256xf32>
    %30 = arith.truncf %29 : vector<8x256xf32> to vector<8x256xbf16>
    %c0_13 = arith.constant 0 : index
    %c0_14 = arith.constant 0 : index
    %31 = vector.load %arg4[%c0_13, %c0_14] : memref<256x128xf32, #tpu.memory_space<vmem>>, vector<256x128xf32>
    %32 = arith.truncf %31 : vector<256x128xf32> to vector<256x128xbf16>
    %cst_15 = arith.constant dense<0.000000e+00> : vector<8x128xf32>
    %33 = tpu.matmul %30, %32, %cst_15 {dimension_numbers = #tpu.dot_dimension_numbers<[1], [0], [0], [1], [0, 0, 1, 1], [], []>} : vector<8x256xbf16>, vector<256x128xbf16>, vector<8x128xf32> -> vector<8x128xf32>
    %c0_16 = arith.constant 0 : index
    %c0_17 = arith.constant 0 : index
    %34 = vector.load %arg5[%c0_16, %c0_17] : memref<1x128xf32, #tpu.memory_space<vmem>>, vector<1x128xf32>
    %35 = vector.broadcast %34 : vector<1x128xf32> to vector<8x128xf32>
    %36 = arith.addf %33, %35 : vector<8x128xf32>
    %37 = arith.mulf %36, %36 : vector<8x128xf32>
    %cst_18 = arith.constant dense<0.000000e+00> : vector<128xf32>
    %38 = vector.multi_reduction <add>, %37, %cst_18 [0] : vector<8x128xf32> to vector<128xf32>
    %39 = vector.shape_cast %38 : vector<128xf32> to vector<1x128xf32>
    %40 = vector.extract_strided_slice %39 {offsets = [0, 2], sizes = [1, 3], strides = [1, 1]} : vector<1x128xf32> to vector<1x3xf32>
    %41 = vector.shape_cast %40 : vector<1x3xf32> to vector<1x1x3xf32>
    %cst_19 = arith.constant dense<0.000000e+00> : vector<1xf32>
    %42 = vector.multi_reduction <add>, %41, %cst_19 [1, 2] : vector<1x1x3xf32> to vector<1xf32>
    %43 = vector.shape_cast %42 : vector<1xf32> to vector<1x1x1xf32>
    %44 = vector.extract %43[0, 0, 0] : f32 from vector<1x1x1xf32>
    %45 = math.rsqrt %44 : f32
    %46 = vector.extract_strided_slice %39 {offsets = [0, 5], sizes = [1, 3], strides = [1, 1]} : vector<1x128xf32> to vector<1x3xf32>
    %47 = vector.shape_cast %46 : vector<1x3xf32> to vector<1x1x3xf32>
    %cst_20 = arith.constant dense<0.000000e+00> : vector<1xf32>
    %48 = vector.multi_reduction <add>, %47, %cst_20 [1, 2] : vector<1x1x3xf32> to vector<1xf32>
    %49 = vector.shape_cast %48 : vector<1xf32> to vector<1x1x1xf32>
    %50 = vector.extract %49[0, 0, 0] : f32 from vector<1x1x1xf32>
    %51 = math.rsqrt %50 : f32
    %52 = tpu.iota {dimensions = array<i32: 1>} : vector<1x128xi32>
    %c2_i32 = arith.constant 2 : i32
    %53 = vector.broadcast %c2_i32 : i32 to vector<1x128xi32>
    %54 = arith.cmpi sge, %52, %53 : vector<1x128xi32>
    %c5_i32 = arith.constant 5 : i32
    %55 = vector.broadcast %c5_i32 : i32 to vector<1x128xi32>
    %56 = arith.cmpi slt, %52, %55 : vector<1x128xi32>
    %57 = arith.andi %54, %56 : vector<1x128xi1>
    %c5_i32_21 = arith.constant 5 : i32
    %58 = vector.broadcast %c5_i32_21 : i32 to vector<1x128xi32>
    %59 = arith.cmpi sge, %52, %58 : vector<1x128xi32>
    %c8_i32 = arith.constant 8 : i32
    %60 = vector.broadcast %c8_i32 : i32 to vector<1x128xi32>
    %61 = arith.cmpi slt, %52, %60 : vector<1x128xi32>
    %62 = arith.andi %59, %61 : vector<1x128xi1>
    %cst_22 = arith.constant 1.000000e+00 : f32
    %63 = vector.broadcast %51 : f32 to vector<1x128xf32>
    %64 = vector.broadcast %cst_22 : f32 to vector<1x128xf32>
    %65 = arith.select %62, %63, %64 : vector<1x128xi1>, vector<1x128xf32>
    %66 = vector.broadcast %45 : f32 to vector<1x128xf32>
    %67 = arith.select %57, %66, %65 : vector<1x128xi1>, vector<1x128xf32>
    %68 = vector.broadcast %67 : vector<1x128xf32> to vector<8x128xf32>
    %69 = arith.mulf %36, %68 : vector<8x128xf32>
    %c0_23 = arith.constant 0 : index
    %c0_24 = arith.constant 0 : index
    %70 = vector.load %arg6[%c0_23, %c0_24] : memref<8x128xf32, #tpu.memory_space<vmem>>, vector<8x128xf32>
    tpu.vector_store %arg6[%c0_23, %c0_24], %69 {strides = array<i32>} : memref<8x128xf32, #tpu.memory_space<vmem>>, vector<8x128xf32>,
    return
  }
}

</mosaic_0001>

<llo_original>
// kernel: action_detokenizer_forward.1
$region0: #{action_detokenizer_forward.1}
  #allocation0 [shape = 'u32[]', space=smem, size = 0x4, offset = 0x4, fixed_abs, tag = 'smem constant byte address 0x4 - core index']
  #allocation1 [shape = 'u32[144,128]{1,0:T(1,128)}', space=vmem, size = 0x12000, scoped, tag = 'internal scratch']
  %s0 = inlined_call_operand.vmem [shape: f32[8,32], index: 0, kind: input, shape index: {}]
  %s1 = inlined_call_operand.vmem [shape: f32[32,256], index: 1, kind: input, shape index: {}]
  %s2 = inlined_call_operand.vmem [shape: f32[1,256], index: 2, kind: input, shape index: {}]
  %s3 = inlined_call_operand.vmem [shape: f32[1,256], index: 3, kind: input, shape index: {}]
  %s4 = inlined_call_operand.vmem [shape: f32[256,128], index: 4, kind: input, shape index: {}]
  %s5 = inlined_call_operand.vmem [shape: f32[1,128], index: 5, kind: input, shape index: {}]
  %s6 = inlined_call_operand.hbm [shape: f32[8,128], index: 6, kind: output, shape index: {}]
  %s7 = sld [smem:[#allocation0]]
  $region34: #{action_detokenizer_forward.1} parent=0
    _
  %s9 = ssub.s32 1, %s7
  %s10 = scalar_select 0, %s9, %s7
  $region1: #{action_detokenizer_forward.1} parent=0
    #allocation2 [shape = 'u8[4096]{0}', space=vmem, size = 0x1000, scoped, tag = 'output window, operand 0, single buffered']
    #allocation3 [shape = 's32[1]{0}', space=sflag, size = 0x4, scoped, tag = 'scoped memory for action_detokenizer_forward.1']
    %11 = vsyncpa [#allocation3], 0
    // Predicated region
    $region2: #{action_detokenizer_forward.1} parent=1 // pred_check
      _
    $region3: #{action_detokenizer_forward.1} parent=1 // pred_check_branch
      %13 = sbr.rel (0) target = $region5
    $region4: #{action_detokenizer_forward.1} parent=1 // pred_region
      _
    $region5: #{action_detokenizer_forward.1} parent=1 // pred_fallthru
      _
    // Predicated region
    $region6: #{action_detokenizer_forward.1} parent=1 // pred_check
      _
    $region7: #{action_detokenizer_forward.1} parent=1 // pred_check_branch
      %15 = sbr.rel (0) target = $region9
    $region8: #{action_detokenizer_forward.1} parent=1 // pred_region
      _
    $region9: #{action_detokenizer_forward.1} parent=1 // pred_fallthru
      _
    // Predicated region
    $region10: #{action_detokenizer_forward.1} parent=1 // pred_check
      _
    $region11: #{action_detokenizer_forward.1} parent=1 // pred_check_branch
      %17 = sbr.rel (0) target = $region13
    $region12: #{action_detokenizer_forward.1} parent=1 // pred_region
      _
    $region13: #{action_detokenizer_forward.1} parent=1 // pred_fallthru
      _
    // Predicated region
    $region14: #{action_detokenizer_forward.1} parent=1 // pred_check
      _
    $region15: #{action_detokenizer_forward.1} parent=1 // pred_check_branch
      %19 = sbr.rel (0) target = $region17
    $region16: #{action_detokenizer_forward.1} parent=1 // pred_region
      _
    $region17: #{action_detokenizer_forward.1} parent=1 // pred_fallthru
      _
    // Predicated region
    $region18: #{action_detokenizer_forward.1} parent=1 // pred_check
      _
    $region19: #{action_detokenizer_forward.1} parent=1 // pred_check_branch
      %21 = sbr.rel (0) target = $region21
    $region20: #{action_detokenizer_forward.1} parent=1 // pred_region
      _
    $region21: #{action_detokenizer_forward.1} parent=1 // pred_fallthru
      _
    // Predicated region
    $region22: #{action_detokenizer_forward.1} parent=1 // pred_check
      _
    $region23: #{action_detokenizer_forward.1} parent=1 // pred_check_branch
      %23 = sbr.rel (0) target = $region25
    $region24: #{action_detokenizer_forward.1} parent=1 // pred_region
      _
    $region25: #{action_detokenizer_forward.1} parent=1 // pred_fallthru
      _
    %v25 = vld [vmem:[%s0] sm:$0xff]
    %v26 = vpack.c.bf16 %v25, %v25
    %v27 = vld [vmem:[%s1] sm:$0xff]
    %v28 = vld [vmem:[%s1 + $0x8] sm:$0xff]
    %v29 = vld [vmem:[%s1 + $0x10] sm:$0xff]
    %v30 = vld [vmem:[%s1 + $0x18] sm:$0xff]
    %v31 = vld [vmem:[%s1 + $0x20] sm:$0xff]
    %v32 = vld [vmem:[%s1 + $0x28] sm:$0xff]
    %v33 = vld [vmem:[%s1 + $0x30] sm:$0xff]
    %v34 = vld [vmem:[%s1 + $0x38] sm:$0xff]
    %v35 = vpack.c.bf16 %v29, %v27
    %v36 = vpack.c.bf16 %v30, %v28
    %v37 = vpack.c.bf16 %v33, %v31
    %v38 = vpack.c.bf16 %v34, %v32
    %vm39 = vcmask 261120
    %v41 = vsel %vm39, %v26, 0
    %43 = vmatprep.subr.bf16.mxu0 %v36
    %44 = vmatpush1.bf16.msra.mxu0 %v35
    %45 = vmatprep.subr.bf16.mxu0 %v38
    %46 = vmatpush1.bf16.msra.mxu0 %v37
    %47 = vmatprep.subr.bf16.mxu0 0
    %48 = vmatpush1.bf16.msra.mxu0 0
    %49 = vmatprep.subr.bf16.mxu0 0
    %50 = vmatpush1.bf16.msra.mxu0 0
    %51 = vmatprep.subr.bf16.mxu0 0
    %52 = vmatpush1.bf16.msra.mxu0 0
    %53 = vmatprep.subr.bf16.mxu0 0
    %54 = vmatpush1.bf16.msra.mxu0 0
    %55 = vmatprep.subr.bf16.mxu0 0
    %56 = vmatpush1.bf16.msra.mxu0 0
    %57 = vmatprep.subr.bf16.mxu0 0
    %58 = vmatpush1.bf16.msra.mxu0 0
    %59 = vmatprep.subr.bf16.mxu0 0
    %60 = vmatpush1.bf16.msra.mxu0 0
    %61 = vmatprep.subr.bf16.mxu0 0
    %62 = vmatpush1.bf16.msra.mxu0 0
    %63 = vmatprep.subr.bf16.mxu0 0
    %64 = vmatpush1.bf16.msra.mxu0 0
    %65 = vmatprep.subr.bf16.mxu0 0
    %66 = vmatpush1.bf16.msra.mxu0 0
    %67 = vmatprep.subr.bf16.mxu0 0
    %68 = vmatpush1.bf16.msra.mxu0 0
    %69 = vmatprep.subr.bf16.mxu0 0
    %70 = vmatpush1.bf16.msra.mxu0 0
    %71 = vmatprep.subr.bf16.mxu0 0
    %72 = vmatpush1.bf16.msra.mxu0 0
    %73 = vmatprep.subr.bf16.mxu0 0
    %74 = vmatpush1.bf16.msra.mxu0 0
    %75 = vmatprep.mubr.bf16.mxu0 0
    %76 = vmatmul.mubr.bf16.gmra.mrb[0].mxu0 %v41
    %v77 = vpop.f32.mrb[0].mxu0
    %v78 = vadd.f32 0.0, %v77
    %v79 = vpop.f32.mrb[0].mxu0
    %v80 = vadd.f32 0.0, %v79
    %v81 = vpop.f32.mrb[0].mxu0
    %v82 = vpop.f32.mrb[0].mxu0
    %83 = vdwg.mxu0
    %v84 = vrot.slane %v78, 4
    %v85 = vadd.f32 %v78, %v84
    %v86 = vrot.slane %v85, 2
    %v87 = vadd.f32 %v85, %v86
    %v88 = vrot.slane %v87, 1
    %v89 = vadd.f32 %v87, %v88
    %v90 = vrot.slane %v80, 4
    %v91 = vadd.f32 %v80, %v90
    %v92 = vrot.slane %v91, 2
    %v93 = vadd.f32 %v91, %v92
    %v94 = vrot.slane %v93, 1
    %v95 = vadd.f32 %v93, %v94
    %v96 = vmul.f32 %v78, %v78
    %v97 = vmul.f32 %v80, %v80
    %v98 = vrot.slane %v96, 4
    %v99 = vadd.f32 %v96, %v98
    %v100 = vrot.slane %v99, 2
    %v101 = vadd.f32 %v99, %v100
    %v102 = vrot.slane %v101, 1
    %v103 = vadd.f32 %v101, %v102
    %v104 = vrot.slane %v97, 4
    %v105 = vadd.f32 %v97, %v104
    %v106 = vrot.slane %v105, 2
    %v107 = vadd.f32 %v105, %v106
    %v108 = vrot.slane %v107, 1
    %v109 = vadd.f32 %v107, %v108
    %v110 = vmul.f32 %v89, 0.125
    %v111 = vmul.f32 %v95, 0.125
    %v112 = vmul.f32 %v103, 0.125
    %v113 = vmul.f32 %v109, 0.125
    %v114 = vmul.f32 %v110, %v110
    %v115 = vmul.f32 %v111, %v111
    %v116 = vsub.f32 %v112, %v114
    %v117 = vsub.f32 %v113, %v115
    %v118 = vld [vmem:[%s2] sm:$0x3]
    %v119 = vadd.f32 %v116, 1e-05
    %v120 = vadd.f32 %v117, 1e-05
    %v121 = vrsqrt.pop %v119
    %v122 = vrsqrt.pop %v120
    %v125 = vcombine.low %v121, %v122
    %v127 = vunpack.c.l.s4 1966171168
    %v128 = vunpack.c.0.s8 %v127
    %v129 = vlaneseq
    %v130 = vshrl.u32 %v129, 7
    %v131 = vsub.s32 %v128, %v130
    %v132 = vrot.slane %v125, %v131
    %v134 = vunpack.c.l.s4 1966171168
    %v135 = vunpack.c.0.s8 %v134
    %v136 = vlaneseq
    %v137 = vshrl.u32 %v136, 7
    %v138 = vsub.s32 %v135, %v137
    %v139 = vrot.slane %v132, %v138
    %v141 = vmul.f32 %v118, %v139
    %v142 = vld [vmem:[%s3] sm:$0x3]
    %v144 = vlaneseq
    %v145 = vshrl.u32 %v144, 7
    %v146 = vsub.s32 0, %v145
    %v147 = vrot.slane %v141, %v146
    %v148 = vlaneseq
    %v149 = vshrl.u32 %v148, 7
    %v150 = vsub.s32 1, %v149
    %v151 = vrot.slane %v141, %v150
    %v154 = vmul.f32 %v110, %v147
    %v155 = vmul.f32 %v111, %v151
    %v158 = vcombine.low %v154, %v155
    %v160 = vunpack.c.l.s4 1966171168
    %v161 = vunpack.c.0.s8 %v160
    %v162 = vlaneseq
    %v163 = vshrl.u32 %v162, 7
    %v164 = vsub.s32 %v161, %v163
    %v165 = vrot.slane %v158, %v164
    %v167 = vunpack.c.l.s4 1966171168
    %v168 = vunpack.c.0.s8 %v167
    %v169 = vlaneseq
    %v170 = vshrl.u32 %v169, 7
    %v171 = vsub.s32 %v168, %v170
    %v172 = vrot.slane %v165, %v171
    %v174 = vsub.f32 %v142, %v172
    %v175 = vmul.f32 %v78, %v147
    %v176 = vmul.f32 %v80, %v151
    %v178 = vlaneseq
    %v179 = vshrl.u32 %v178, 7
    %v180 = vsub.s32 0, %v179
    %v181 = vrot.slane %v174, %v180
    %v182 = vlaneseq
    %v183 = vshrl.u32 %v182, 7
    %v184 = vsub.s32 1, %v183
    %v185 = vrot.slane %v174, %v184
    %v188 = vadd.f32 %v175, %v181
    %v189 = vadd.f32 %v176, %v185
    %v190 = vmax.f32 %v188, 0.0
    %v191 = vmax.f32 %v189, 0.0
    %v192 = vpack.c.bf16 %v190, %v190
    %v193 = vpack.c.bf16 %v191, %v191
    %v194 = vld [vmem:[%s4] sm:$0xff]
    %v195 = vld [vmem:[%s4 + $0x8] sm:$0xff]
    %v196 = vld [vmem:[%s4 + $0x10] sm:$0xff]
    %v197 = vld [vmem:[%s4 + $0x18] sm:$0xff]
    %v198 = vld [vmem:[%s4 + $0x20] sm:$0xff]
    %v199 = vld [vmem:[%s4 + $0x28] sm:$0xff]
    %v200 = vld [vmem:[%s4 + $0x30] sm:$0xff]
    %v201 = vld [vmem:[%s4 + $0x38] sm:$0xff]
    %v202 = vld [vmem:[%s4 + $0x40] sm:$0xff]
    %v203 = vld [vmem:[%s4 + $0x48] sm:$0xff]
    %v204 = vld [vmem:[%s4 + $0x50] sm:$0xff]
    %v205 = vld [vmem:[%s4 + $0x58] sm:$0xff]
    %v206 = vld [vmem:[%s4 + $0x60] sm:$0xff]
    %v207 = vld [vmem:[%s4 + $0x68] sm:$0xff]
    %v208 = vld [vmem:[%s4 + $0x70] sm:$0xff]
    %v209 = vld [vmem:[%s4 + $0x78] sm:$0xff]
    %v210 = vld [vmem:[%s4 + $0x80] sm:$0xff]
    %v211 = vld [vmem:[%s4 + $0x88] sm:$0xff]
    %v212 = vld [vmem:[%s4 + $0x90] sm:$0xff]
    %v213 = vld [vmem:[%s4 + $0x98] sm:$0xff]
    %v214 = vld [vmem:[%s4 + $0xa0] sm:$0xff]
    %v215 = vld [vmem:[%s4 + $0xa8] sm:$0xff]
    %v216 = vld [vmem:[%s4 + $0xb0] sm:$0xff]
    %v217 = vld [vmem:[%s4 + $0xb8] sm:$0xff]
    %v218 = vld [vmem:[%s4 + $0xc0] sm:$0xff]
    %v219 = vld [vmem:[%s4 + $0xc8] sm:$0xff]
    %v220 = vld [vmem:[%s4 + $0xd0] sm:$0xff]
    %v221 = vld [vmem:[%s4 + $0xd8] sm:$0xff]
    %v222 = vld [vmem:[%s4 + $0xe0] sm:$0xff]
    %v223 = vld [vmem:[%s4 + $0xe8] sm:$0xff]
    %v224 = vld [vmem:[%s4 + $0xf0] sm:$0xff]
    %v225 = vld [vmem:[%s4 + $0xf8] sm:$0xff]
    %v226 = vpack.c.bf16 %v195, %v194
    %v227 = vpack.c.bf16 %v197, %v196
    %v228 = vpack.c.bf16 %v199, %v198
    %v229 = vpack.c.bf16 %v201, %v200
    %v230 = vpack.c.bf16 %v203, %v202
    %v231 = vpack.c.bf16 %v205, %v204
    %v232 = vpack.c.bf16 %v207, %v206
    %v233 = vpack.c.bf16 %v209, %v208
    %v234 = vpack.c.bf16 %v211, %v210
    %v235 = vpack.c.bf16 %v213, %v212
    %v236 = vpack.c.bf16 %v215, %v214
    %v237 = vpack.c.bf16 %v217, %v216
    %v238 = vpack.c.bf16 %v219, %v218
    %v239 = vpack.c.bf16 %v221, %v220
    %v240 = vpack.c.bf16 %v223, %v222
    %v241 = vpack.c.bf16 %v225, %v224
    %v242 = vld [vmem:[%s5] sm:$0x1]
    %v244 = vlaneseq
    %v245 = vshrl.u32 %v244, 7
    %v246 = vsub.s32 0, %v245
    %v247 = vrot.slane %v242, %v246
    %249 = vmatprep.subr.bf16.mxu0 0
    %250 = vmatpush1.bf16.msra.mxu0 %v226
    %251 = vmatprep.subr.bf16.mxu0 0
    %252 = vmatpush1.bf16.msra.mxu0 %v227
    %253 = vmatprep.subr.bf16.mxu0 0
    %254 = vmatpush1.bf16.msra.mxu0 %v228
    %255 = vmatprep.subr.bf16.mxu0 0
    %256 = vmatpush1.bf16.msra.mxu0 %v229
    %257 = vmatprep.subr.bf16.mxu0 0
    %258 = vmatpush1.bf16.msra.mxu0 %v230
    %259 = vmatprep.subr.bf16.mxu0 0
    %260 = vmatpush1.bf16.msra.mxu0 %v231
    %261 = vmatprep.subr.bf16.mxu0 0
    %262 = vmatpush1.bf16.msra.mxu0 %v232
    %263 = vmatprep.subr.bf16.mxu0 0
    %264 = vmatpush1.bf16.msra.mxu0 %v233
    %265 = vmatprep.subr.bf16.mxu0 0
    %266 = vmatpush1.bf16.msra.mxu0 %v234
    %267 = vmatprep.subr.bf16.mxu0 0
    %268 = vmatpush1.bf16.msra.mxu0 %v235
    %269 = vmatprep.subr.bf16.mxu0 0
    %270 = vmatpush1.bf16.msra.mxu0 %v236
    %271 = vmatprep.subr.bf16.mxu0 0
    %272 = vmatpush1.bf16.msra.mxu0 %v237
    %273 = vmatprep.subr.bf16.mxu0 0
    %274 = vmatpush1.bf16.msra.mxu0 %v238
    %275 = vmatprep.subr.bf16.mxu0 0
    %276 = vmatpush1.bf16.msra.mxu0 %v239
    %277 = vmatprep.subr.bf16.mxu0 0
    %278 = vmatpush1.bf16.msra.mxu0 %v240
    %279 = vmatprep.subr.bf16.mxu0 0
    %280 = vmatpush1.bf16.msra.mxu0 %v241
    %281 = vmatprep.mubr.bf16.mxu0 %v193
    %282 = vmatmul.mubr.bf16.gmra.mrb[0].mxu0 %v192
    %v283 = vpop.f32.mrb[0].mxu0
    %v284 = vadd.f32 %v247, %v283
    %v285 = vpop.f32.mrb[0].mxu0
    %v286 = vpop.f32.mrb[0].mxu0
    %v287 = vpop.f32.mrb[0].mxu0
    %288 = vdwg.mxu0
    %v289 = vmul.f32 %v284, %v284
    %v290 = vrot.slane %v289, 4
    %v291 = vadd.f32 %v289, %v290
    %v292 = vrot.slane %v291, 2
    %v293 = vadd.f32 %v291, %v292
    %v294 = vrot.slane %v293, 1
    %v295 = vadd.f32 %v293, %v294
    %297 = vrot.lane.b32.xlu0 %v295, 126
    %v298 = vpop.permute.xlu0 %297
    %vm300 = vcmask 16384
    %v301 = vsel %vm300, %v298, 0.0
    %302 = vadd.xlane.f32.xlu0 %v301
    %v303 = vpop.xlane.xlu0 %302
    %v304 = vrot.slane %v303, 4
    %v305 = vadd.f32 %v303, %v304
    %v306 = vrot.slane %v305, 2
    %v307 = vadd.f32 %v305, %v306
    %v308 = vrot.slane %v307, 1
    %v309 = vadd.f32 %v307, %v308
    %s310 = vtos %v309
    %v311 = vstv %s310
    %v312 = vrsqrt.pop %v311
    %s313 = vtos %v312
    %314 = vrot.lane.b32.xlu0 %v295, 123
    %v315 = vpop.permute.xlu0 %314
    %v317 = vsel %vm300, %v315, 0.0
    %318 = vadd.xlane.f32.xlu0 %v317
    %v319 = vpop.xlane.xlu0 %318
    %v320 = vrot.slane %v319, 4
    %v321 = vadd.f32 %v319, %v320
    %v322 = vrot.slane %v321, 2
    %v323 = vadd.f32 %v321, %v322
    %v324 = vrot.slane %v323, 1
    %v325 = vadd.f32 %v323, %v324
    %s326 = vtos %v325
    %v327 = vstv %s326
    %v328 = vrsqrt.pop %v327
    %s329 = vtos %v328
    %v330 = vlaneseq
    %v331 = vand.u32 %v330, 127
    %vm332 = vcmp.ge.s32.totalorder %v331, 2
    %vm333 = vcmp.lt.s32.totalorder %v331, 5
    %vm334 = vmand %vm332, %vm333
    %vm335 = vcmp.ge.s32.totalorder %v331, 5
    %vm336 = vcmp.lt.s32.totalorder %v331, 8
    %vm337 = vmand %vm335, %vm336
    %v338 = vstv %s329
    %v339 = vsel %vm337, %v338, 1.0
    %v340 = vstv %s313
    %v341 = vsel %vm334, %v340, %v339
    %v342 = vmul.f32 %v284, %v341
    %343 = vst [vmem:[#allocation2] sm:$0xff] %v342
    // Predicated region
    $region26: #{action_detokenizer_forward.1} parent=1 // pred_check
      _
    $region27: #{action_detokenizer_forward.1} parent=1 // pred_check_branch
      %345 = sbr.rel (0) target = $region29
    $region28: #{action_detokenizer_forward.1} parent=1 // pred_region
      %s347 = ssub.s32 128, 128
      %348 = vsyncadd [#allocation3], %s347
      %s350 = sshll.u32 [#allocation2], 4
      %s351 = int_to_ptr.vmem [resolvable:$true] %s350
      %353 = dma.vmem_to_hbm [thread:$0]  %s351, 128, %s6, [#allocation3]
    $region29: #{action_detokenizer_forward.1} parent=1 // pred_fallthru
      _
    // Predicated region
    $region30: #{action_detokenizer_forward.1} parent=1 // pred_check
      _
    $region31: #{action_detokenizer_forward.1} parent=1 // pred_check_branch
      %355 = sbr.rel (0) target = $region33
    $region32: #{action_detokenizer_forward.1} parent=1 // pred_region
      %356 = dma.done [#allocation3], 128
    $region33: #{action_detokenizer_forward.1} parent=1 // pred_fallthru
      _
    %357 = vsyncpa [#allocation3], 1

</llo_original>
